<compile_context>
chip_gen: v6e
topology: v6e:2x2x1
jax: 0.10.0
libtpu: 0.0.40
codegen_flags: <defaults>
</compile_context>

<pallas_src>
import math

import numpy as np
import jax
import jax.numpy as jnp
from jax.experimental import pallas as pl
from jax.experimental.pallas import tpu as pltpu  # noqa: F401  (TPU backend)

# ----------------------------- small-shape config -----------------------------
IN_CHANNELS = 3            # no normals -> single xyz branch
BAND_WIDTH_IN = 8          # b_in  (sphere grid 16x16)
FEATURE_CHANNELS = (8, 8)
BAND_WIDTH_LIST = (4, 2)   # b after S2 conv, b after SO3 conv
BATCH = 2
N_POINTS = 64
BN_EPS = 1e-5

# ============================== Pallas kernels ================================


def _conv_bn_relu_kernel(g_ref, w_ref, b_ref, s_ref, t_ref, o_ref):
    """o = relu((w @ g + bias) * scale + shift), lane-dense (C_out, M) output."""
    y = jnp.dot(w_ref[...], g_ref[...], preferred_element_type=jnp.float32)
    y = (y + b_ref[...]) * s_ref[...] + t_ref[...]
    o_ref[...] = jnp.maximum(y, 0.0)


def pallas_conv_bn_relu(g_t, w_t, bias, scale, shift):
    """g_t: (K, M), w_t: (C, K), bias/scale/shift: (C, 1) -> (C, M)."""
    C, K = w_t.shape
    M = g_t.shape[1]
    return pl.pallas_call(
        _conv_bn_relu_kernel,
        out_shape=jax.ShapeDtypeStruct((C, M), jnp.float32),
        grid=(1,),
        in_specs=[
            pl.BlockSpec((K, M), lambda i: (0, 0)),
            pl.BlockSpec((C, K), lambda i: (0, 0)),
            pl.BlockSpec((C, 1), lambda i: (0, 0)),
            pl.BlockSpec((C, 1), lambda i: (0, 0)),
            pl.BlockSpec((C, 1), lambda i: (0, 0)),
        ],
        out_specs=pl.BlockSpec((C, M), lambda i: (0, 0)),
    )(g_t, w_t, bias, scale, shift)


def _conv_bn_relu_integrate_kernel(g_ref, w_ref, b_ref, s_ref, t_ref, wint_ref, o_ref):
    """Fused SO3 conv + BN + ReLU + SO(3) quadrature integration epilogue."""
    y = jnp.dot(w_ref[...], g_ref[...], preferred_element_type=jnp.float32)
    y = jnp.maximum((y + b_ref[...]) * s_ref[...] + t_ref[...], 0.0)   # (C, Rn*B)
    o_ref[...] = jnp.dot(y, wint_ref[...], preferred_element_type=jnp.float32)  # (C, B)


def pallas_conv_bn_relu_integrate(g_t, w_t, bias, scale, shift, wint):
    """g_t: (K, M), w_t: (C, K), bias/scale/shift: (C, 1), wint: (M, B) -> (C, B)."""
    C, K = w_t.shape
    M = g_t.shape[1]
    Bsz = wint.shape[1]
    return pl.pallas_call(
        _conv_bn_relu_integrate_kernel,
        out_shape=jax.ShapeDtypeStruct((C, Bsz), jnp.float32),
        grid=(1,),
        in_specs=[
            pl.BlockSpec((K, M), lambda i: (0, 0)),
            pl.BlockSpec((C, K), lambda i: (0, 0)),
            pl.BlockSpec((C, 1), lambda i: (0, 0)),
            pl.BlockSpec((C, 1), lambda i: (0, 0)),
            pl.BlockSpec((C, 1), lambda i: (0, 0)),
            pl.BlockSpec((M, Bsz), lambda i: (0, 0)),
        ],
        out_specs=pl.BlockSpec((C, Bsz), lambda i: (0, 0)),
    )(g_t, w_t, bias, scale, shift, wint)


# ====================== static (numpy) grid / index setup =====================


def _rz(t):
    c, s = np.cos(t), np.sin(t)
    z, o = np.zeros_like(t), np.ones_like(t)
    return np.stack([np.stack([c, -s, z], -1),
                     np.stack([s, c, z], -1),
                     np.stack([z, z, o], -1)], -2)


def _ry(t):
    c, s = np.cos(t), np.sin(t)
    z, o = np.zeros_like(t), np.ones_like(t)
    return np.stack([np.stack([c, z, s], -1),
                     np.stack([z, o, z], -1),
                     np.stack([-s, z, c], -1)], -2)


def _rot_zyz(a, b, g):
    return _rz(a) @ _ry(b) @ _rz(g)


def _nearest_beta_idx(beta, b):
    # beta grid: pi * (2j + 1) / (4b)
    j = np.rint(beta * (4.0 * b) / np.pi / 2.0 - 0.5)
    return np.clip(j, 0, 2 * b - 1).astype(np.int32)


def _nearest_alpha_idx(alpha, b):
    k = np.rint(alpha * (2.0 * b) / (2.0 * np.pi))
    return np.mod(k, 2 * b).astype(np.int32)


def _so3_output_grid(b_out):
    beta = np.pi * (2 * np.arange(2 * b_out) + 1) / (4 * b_out)
    alpha = 2 * np.pi * np.arange(2 * b_out) / (2 * b_out)
    gamma = 2 * np.pi * np.arange(2 * b_out) / (2 * b_out)
    Bm, Am, Gm = np.meshgrid(beta, alpha, gamma, indexing="ij")
    return Am.ravel(), Bm.ravel(), Gm.ravel()   # flattened (beta, alpha, gamma)


def s2_conv_sample_indices(b_in, b_out):
    """Nearest-neighbor input indices for h(R) = sum_j w_j f(R x_j), x_j on equator."""
    a_o, b_o, g_o = _so3_output_grid(b_out)
    R = _rot_zyz(a_o, b_o, g_o)                              # (Rn, 3, 3)
    ka = 2 * np.pi * np.arange(2 * b_in) / (2 * b_in)        # s2_equatorial_grid alphas
    xj = np.stack([np.cos(ka), np.sin(ka), np.zeros_like(ka)], -1)  # equator points
    p = np.einsum("rij,kj->rki", R, xj)                      # (Rn, J, 3)
    beta_p = np.arccos(np.clip(p[..., 2], -1.0, 1.0))
    alpha_p = np.mod(np.arctan2(p[..., 1], p[..., 0]), 2 * np.pi)
    bi = _nearest_beta_idx(beta_p, b_in)
    ai = _nearest_alpha_idx(alpha_p, b_in)
    return (bi * (2 * b_in) + ai).astype(np.int32)           # (Rn, J)


def so3_conv_sample_indices(b_in, b_out):
    """Nearest-neighbor input indices for h(R) = sum_j w_j f(R Q_j)."""
    a_o, b_o, g_o = _so3_output_grid(b_out)
    R = _rot_zyz(a_o, b_o, g_o)                              # (Rn, 3, 3)
    # so3_equatorial_grid(max_beta=0, max_gamma=0): beta=pi/2, gamma = -alpha
    ka = 2 * np.pi * np.arange(2 * b_in) / (2 * b_in)
    kb = np.full_like(ka, np.pi / 2)
    kg = -ka
    Q = _rot_zyz(ka, kb, kg)                                 # (J, 3, 3)
    P = np.einsum("ril,kls->rkis", R, Q)                     # (Rn, J, 3, 3)
    beta_p = np.arccos(np.clip(P[..., 2, 2], -1.0, 1.0))
    sb = np.sin(beta_p)
    alpha_p = np.mod(np.arctan2(P[..., 1, 2], P[..., 0, 2]), 2 * np.pi)
    gamma_p = np.mod(np.arctan2(P[..., 2, 1], -P[..., 2, 0]), 2 * np.pi)
    deg = sb < 1e-7
    alpha_deg = np.mod(np.arctan2(P[..., 1, 0], P[..., 0, 0]), 2 * np.pi)
    alpha_p = np.where(deg, alpha_deg, alpha_p)
    gamma_p = np.where(deg, 0.0, gamma_p)
    bi = _nearest_beta_idx(beta_p, b_in)
    ai = _nearest_alpha_idx(alpha_p, b_in)
    gi = _nearest_alpha_idx(gamma_p, b_in)
    n = 2 * b_in
    return (bi * n * n + ai * n + gi).astype(np.int32)       # (Rn, J)


def so3_quadrature_weights(b):
    k = np.arange(b)
    w = np.array([
        (2.0 / b) * np.sin(np.pi * (2 * j + 1) / (4.0 * b))
        * np.sum(np.sin((2 * j + 1) * (2 * k + 1) * np.pi / (4.0 * b)) / (2 * k + 1))
        for j in range(2 * b)
    ])
    w /= 2.0 * (2 * b) ** 2    # lie_learn SOFT normalization
    return w.astype(np.float32)


def _build_static(b_in, b1, b2, c1):
    """All trace-time constants, built exactly once (hoisted out of the jitted forward)."""
    idx1 = s2_conv_sample_indices(b_in, b1)                  # (Rn1, J1)
    idx2 = so3_conv_sample_indices(b1, b2)                   # (Rn2, J2)
    Rn1, J1 = idx1.shape
    Rn2, J2 = idx2.shape
    n2 = 2 * b2
    wq_beta = so3_quadrature_weights(b2)                     # (2*b2,)
    wq_r = np.repeat(wq_beta, n2 * n2).astype(np.float32)    # (Rn2,), weight per (beta,alpha,gamma)
    s2_scaling = 1.0 / math.sqrt(J1 * 1 * (b1 ** 4) / (b_in ** 2))
    so3_scaling = 1.0 / math.sqrt(J2 * c1 * (b2 ** 3) / (b1 ** 3))
    return dict(
        J1=J1, Rn1=Rn1, G1=(2 * b1) ** 3,
        J2=J2, Rn2=Rn2,
        idx1_t_flat=jnp.asarray(idx1.T.ravel()),             # (J1*Rn1,)
        idx2_t_flat=jnp.asarray(idx2.T.ravel()),             # (J2*Rn2,)
        wq_r=jnp.asarray(wq_r),
        s2_scaling=s2_scaling,
        so3_scaling=so3_scaling,
    )


_STATIC = _build_static(BAND_WIDTH_IN, BAND_WIDTH_LIST[0], BAND_WIDTH_LIST[1],
                        FEATURE_CHANNELS[0])


# ============================ forward-pass pieces =============================


def project_pointcloud_t(points, b):
    """PointCloudProjector (approx): (B, 3, N) -> (G_in, B) scatter-max of radius.

    Output is directly in the transposed (grid, batch) layout used by the conv stage.
    """
    Bsz, _, N = points.shape
    px, py, pz = points[:, 0], points[:, 1], points[:, 2]
    r = jnp.sqrt(px * px + py * py + pz * pz) + 1e-8
    beta = jnp.arccos(jnp.clip(pz / r, -1.0, 1.0))
    alpha = jnp.mod(jnp.arctan2(py, px), 2.0 * jnp.pi)
    n = 2 * b
    bi = jnp.clip(jnp.rint(beta * (4.0 * b) / jnp.pi / 2.0 - 0.5), 0, n - 1).astype(jnp.int32)
    ai = jnp.mod(jnp.rint(alpha * (2.0 * b) / (2.0 * jnp.pi)), n).astype(jnp.int32)
    flat = bi * n + ai                                       # (B, N)
    sig_t = jnp.zeros((n * n, Bsz), jnp.float32)
    bidx = jnp.broadcast_to(jnp.arange(Bsz)[None, :], (N, Bsz))
    sig_t = sig_t.at[flat.T, bidx].max(r.T)
    return sig_t                                             # (G_in, B)


def s2cnn_feature_forward(x, params):
    st = _STATIC
    b_in = BAND_WIDTH_IN
    c1, c2 = FEATURE_CHANNELS
    Bsz = x.shape[0]

    # ---- point cloud -> S2 signal (transposed layout, kept in XLA) ----
    sig_t = project_pointcloud_t(x, b_in)                    # (G_in, B) = (256, B)

    # ---- stage 1: S2Convolution(1 -> c1) + BatchNorm3d(c1) + ReLU, fused ----
    # gather: G1_T[j, r*B + b] = sig[b, idx1[r, j]]
    g1 = jnp.take(sig_t, st["idx1_t_flat"], axis=0)          # (J1*Rn1, B)
    g1 = g1.reshape(st["J1"], st["Rn1"] * Bsz)               # (16, Rn1*B)
    w1_t = (params["s2_kernel"] * st["s2_scaling"]).transpose(1, 0, 2).reshape(c1, -1)  # (c1, J1)
    scale1 = (params["bn1_gamma"] / jnp.sqrt(1.0 + BN_EPS)).reshape(c1, 1)
    shift1 = params["bn1_beta"].reshape(c1, 1)
    h_t = pallas_conv_bn_relu(g1, w1_t, params["s2_bias"].reshape(c1, 1), scale1, shift1)
    # h_t: (c1, G1*B) == flattened (c1, G1, B) SO3 signal at bandwidth b1

    # ---- stage 2: SO3Convolution(c1 -> c2) + BatchNorm3d(c2) + ReLU + so3_integrate, fused ----
    h_t3 = h_t.reshape(c1, st["G1"], Bsz)
    g2 = jnp.take(h_t3, st["idx2_t_flat"], axis=1)           # (c1, J2*Rn2, B)
    g2 = g2.reshape(c1 * st["J2"], st["Rn2"] * Bsz)          # (c1*J2, Rn2*B)
    w2_t = (params["so3_kernel"] * st["so3_scaling"]).transpose(1, 0, 2).reshape(c2, -1)  # (c2, c1*J2)
    scale2 = (params["bn2_gamma"] / jnp.sqrt(1.0 + BN_EPS)).reshape(c2, 1)
    shift2 = params["bn2_beta"].reshape(c2, 1)
    # quadrature matrix: Wint[r*B + b, b'] = w_beta[r] * (b == b')   (constant-folded by XLA)
    wint = (st["wq_r"][:, None, None]
            * jnp.eye(Bsz, dtype=jnp.float32)[None]).reshape(st["Rn2"] * Bsz, Bsz)
    out_t = pallas_conv_bn_relu_integrate(
        g2, w2_t, params["so3_bias"].reshape(c2, 1), scale2, shift2, wint)   # (c2, B)

    return out_t.T                                           # (B, c2) == inter_feature


# ================================== main ======================================

if __name__ == "__main__":
    c1, c2 = FEATURE_CHANNELS
    j1 = 2 * BAND_WIDTH_IN          # S2 equatorial grid size
    j2 = 2 * BAND_WIDTH_LIST[0]     # SO3 equatorial grid size

    key = jax.random.PRNGKey(0)
    ks = jax.random.split(key, 8)
    params = {
        "s2_kernel": jax.random.normal(ks[0], (1, c1, j1), jnp.float32),
        "s2_bias": jnp.zeros((c1,), jnp.float32),
        "so3_kernel": jax.random.normal(ks[1], (c1, c2, j2), jnp.float32),
        "so3_bias": jnp.zeros((c2,), jnp.float32),
        "bn1_gamma": 1.0 + 0.1 * jax.random.normal(ks[2], (c1,), jnp.float32),
        "bn1_beta": 0.1 * jax.random.normal(ks[3], (c1,), jnp.float32),
        "bn2_gamma": 1.0 + 0.1 * jax.random.normal(ks[4], (c2,), jnp.float32),
        "bn2_beta": 0.1 * jax.random.normal(ks[5], (c2,), jnp.float32),
    }

    x = jax.random.normal(ks[6], (BATCH, IN_CHANNELS, N_POINTS), jnp.float32)

    feat = jax.jit(s2cnn_feature_forward)(x, params)
    feat = jax.block_until_ready(feat)

    assert feat.shape == (BATCH, FEATURE_CHANNELS[-1]), feat.shape
    assert feat.dtype == jnp.float32
    assert bool(jnp.all(jnp.isfinite(feat)))
    print("KERNEL_OK")
</pallas_src>

<mosaic_0001>
module attributes {stable_mosaic.version = 11 : i64} {
  func.func private @main(%arg0: i32) attributes {dimension_semantics = [#tpu.dimension_semantics<core_parallel>], iteration_bounds = array<i64: 2>, tpu.core_type = #tpu.core_type<sc_scalar_subcore>, window_params = []} {
    return
  }
}

module attributes {stable_mosaic.version = 11 : i64} {
  func.func private @main(%arg0: i32) attributes {dimension_semantics = [#tpu.dimension_semantics<core_parallel>], iteration_bounds = array<i64: 2>, tpu.core_type = #tpu.core_type<sc_scalar_subcore>, window_params = []} {
    return
  }
}

module attributes {stable_mosaic.version = 11 : i64} {
  func.func @_conv_bn_relu_kernel(%arg0: i32, %arg1: memref<16x1024xf32, #tpu.memory_space<vmem>>, %arg2: memref<8x16xf32, #tpu.memory_space<vmem>>, %arg3: memref<8x1xf32, #tpu.memory_space<vmem>>, %arg4: memref<8x1xf32, #tpu.memory_space<vmem>>, %arg5: memref<8x1xf32, #tpu.memory_space<vmem>>, %arg6: memref<8x1024xf32, #tpu.memory_space<vmem>>) attributes {dimension_semantics = [#tpu.dimension_semantics<arbitrary>], iteration_bounds = array<i64: 1>, scalar_prefetch = 0 : i64, scratch_operands = 0 : i64, tpu.core_type = #tpu.core_type<tc>, window_params = [{pipeline_mode = #tpu.pipeline_mode<synchronous>, transform_indices = @transform_0, window_bounds = array<i64: 16, 1024>}, {pipeline_mode = #tpu.pipeline_mode<synchronous>, transform_indices = @transform_1, window_bounds = array<i64: 8, 16>}, {pipeline_mode = #tpu.pipeline_mode<synchronous>, transform_indices = @transform_2, window_bounds = array<i64: 8, 1>}, {pipeline_mode = #tpu.pipeline_mode<synchronous>, transform_indices = @transform_3, window_bounds = array<i64: 8, 1>}, {pipeline_mode = #tpu.pipeline_mode<synchronous>, transform_indices = @transform_4, window_bounds = array<i64: 8, 1>}, {pipeline_mode = #tpu.pipeline_mode<synchronous>, transform_indices = @transform_5, window_bounds = array<i64: 8, 1024>}]} {
    %c0 = arith.constant 0 : index
    %c0_0 = arith.constant 0 : index
    %0 = vector.load %arg2[%c0, %c0_0] : memref<8x16xf32, #tpu.memory_space<vmem>>, vector<8x16xf32>
    %c0_1 = arith.constant 0 : index
    %c0_2 = arith.constant 0 : index
    %1 = vector.load %arg1[%c0_1, %c0_2] : memref<16x1024xf32, #tpu.memory_space<vmem>>, vector<16x1024xf32>
    %cst = arith.constant dense<0.000000e+00> : vector<8x1024xf32>
    %2 = tpu.matmul %0, %1, %cst {dimension_numbers = #tpu.dot_dimension_numbers<[1], [0], [0], [1], [0, 0, 1, 1], [], []>} : vector<8x16xf32>, vector<16x1024xf32>, vector<8x1024xf32> -> vector<8x1024xf32>
    %c0_3 = arith.constant 0 : index
    %c0_4 = arith.constant 0 : index
    %3 = vector.load %arg3[%c0_3, %c0_4] : memref<8x1xf32, #tpu.memory_space<vmem>>, vector<8x1xf32>
    %4 = vector.broadcast %3 : vector<8x1xf32> to vector<8x1024xf32>
    %5 = arith.addf %2, %4 : vector<8x1024xf32>
    %c0_5 = arith.constant 0 : index
    %c0_6 = arith.constant 0 : index
    %6 = vector.load %arg4[%c0_5, %c0_6] : memref<8x1xf32, #tpu.memory_space<vmem>>, vector<8x1xf32>
    %7 = vector.broadcast %6 : vector<8x1xf32> to vector<8x1024xf32>
    %8 = arith.mulf %5, %7 : vector<8x1024xf32>
    %c0_7 = arith.constant 0 : index
    %c0_8 = arith.constant 0 : index
    %9 = vector.load %arg5[%c0_7, %c0_8] : memref<8x1xf32, #tpu.memory_space<vmem>>, vector<8x1xf32>
    %10 = vector.broadcast %9 : vector<8x1xf32> to vector<8x1024xf32>
    %11 = arith.addf %8, %10 : vector<8x1024xf32>
    %cst_9 = arith.constant 0.000000e+00 : f32
    %12 = vector.broadcast %cst_9 : f32 to vector<8x1024xf32>
    %13 = arith.maximumf %11, %12 : vector<8x1024xf32>
    %c0_10 = arith.constant 0 : index
    %c0_11 = arith.constant 0 : index
    %14 = vector.load %arg6[%c0_10, %c0_11] : memref<8x1024xf32, #tpu.memory_space<vmem>>, vector<8x1024xf32>
    tpu.vector_store %arg6[%c0_10, %c0_11], %13 {strides = array<i32>} : memref<8x1024xf32, #tpu.memory_space<vmem>>, vector<8x1024xf32>,
    return
  }
  func.func @transform_0(%arg0: i32) -> (i32, i32) {
    %c0_i32 = arith.constant 0 : i32
    %c0_i32_0 = arith.constant 0 : i32
    %c0_i32_1 = arith.constant 0 : i32
    return %c0_i32, %c0_i32_0 : i32, i32
  }
  func.func @transform_1(%arg0: i32) -> (i32, i32) {
    %c0_i32 = arith.constant 0 : i32
    %c0_i32_0 = arith.constant 0 : i32
    %c0_i32_1 = arith.constant 0 : i32
    return %c0_i32, %c0_i32_0 : i32, i32
  }
  func.func @transform_2(%arg0: i32) -> (i32, i32) {
    %c0_i32 = arith.constant 0 : i32
    %c0_i32_0 = arith.constant 0 : i32
    %c0_i32_1 = arith.constant 0 : i32
    return %c0_i32, %c0_i32_0 : i32, i32
  }
  func.func @transform_3(%arg0: i32) -> (i32, i32) {
    %c0_i32 = arith.constant 0 : i32
    %c0_i32_0 = arith.constant 0 : i32
    %c0_i32_1 = arith.constant 0 : i32
    return %c0_i32, %c0_i32_0 : i32, i32
  }
  func.func @transform_4(%arg0: i32) -> (i32, i32) {
    %c0_i32 = arith.constant 0 : i32
    %c0_i32_0 = arith.constant 0 : i32
    %c0_i32_1 = arith.constant 0 : i32
    return %c0_i32, %c0_i32_0 : i32, i32
  }
  func.func @transform_5(%arg0: i32) -> (i32, i32) {
    %c0_i32 = arith.constant 0 : i32
    %c0_i32_0 = arith.constant 0 : i32
    %c0_i32_1 = arith.constant 0 : i32
    return %c0_i32, %c0_i32_0 : i32, i32
  }
}

module attributes {stable_mosaic.version = 11 : i64} {
  func.func @_conv_bn_relu_integrate_kernel(%arg0: i32, %arg1: memref<64x128xf32, #tpu.memory_space<vmem>>, %arg2: memref<8x64xf32, #tpu.memory_space<vmem>>, %arg3: memref<8x1xf32, #tpu.memory_space<vmem>>, %arg4: memref<8x1xf32, #tpu.memory_space<vmem>>, %arg5: memref<8x1xf32, #tpu.memory_space<vmem>>, %arg6: memref<128x2xf32, #tpu.memory_space<vmem>>, %arg7: memref<8x2xf32, #tpu.memory_space<vmem>>) attributes {dimension_semantics = [#tpu.dimension_semantics<arbitrary>], iteration_bounds = array<i64: 1>, scalar_prefetch = 0 : i64, scratch_operands = 0 : i64, tpu.core_type = #tpu.core_type<tc>, window_params = [{pipeline_mode = #tpu.pipeline_mode<synchronous>, transform_indices = @transform_0, window_bounds = array<i64: 64, 128>}, {pipeline_mode = #tpu.pipeline_mode<synchronous>, transform_indices = @transform_1, window_bounds = array<i64: 8, 64>}, {pipeline_mode = #tpu.pipeline_mode<synchronous>, transform_indices = @transform_2, window_bounds = array<i64: 8, 1>}, {pipeline_mode = #tpu.pipeline_mode<synchronous>, transform_indices = @transform_3, window_bounds = array<i64: 8, 1>}, {pipeline_mode = #tpu.pipeline_mode<synchronous>, transform_indices = @transform_4, window_bounds = array<i64: 8, 1>}, {pipeline_mode = #tpu.pipeline_mode<synchronous>, transform_indices = @transform_5, window_bounds = array<i64: 128, 2>}, {pipeline_mode = #tpu.pipeline_mode<synchronous>, transform_indices = @transform_6, window_bounds = array<i64: 8, 2>}]} {
    %c0 = arith.constant 0 : index
    %c0_0 = arith.constant 0 : index
    %0 = vector.load %arg2[%c0, %c0_0] : memref<8x64xf32, #tpu.memory_space<vmem>>, vector<8x64xf32>
    %c0_1 = arith.constant 0 : index
    %c0_2 = arith.constant 0 : index
    %1 = vector.load %arg1[%c0_1, %c0_2] : memref<64x128xf32, #tpu.memory_space<vmem>>, vector<64x128xf32>
    %cst = arith.constant dense<0.000000e+00> : vector<8x128xf32>
    %2 = tpu.matmul %0, %1, %cst {dimension_numbers = #tpu.dot_dimension_numbers<[1], [0], [0], [1], [0, 0, 1, 1], [], []>} : vector<8x64xf32>, vector<64x128xf32>, vector<8x128xf32> -> vector<8x128xf32>
    %c0_3 = arith.constant 0 : index
    %c0_4 = arith.constant 0 : index
    %3 = vector.load %arg3[%c0_3, %c0_4] : memref<8x1xf32, #tpu.memory_space<vmem>>, vector<8x1xf32>
    %4 = vector.broadcast %3 : vector<8x1xf32> to vector<8x128xf32>
    %5 = arith.addf %2, %4 : vector<8x128xf32>
    %c0_5 = arith.constant 0 : index
    %c0_6 = arith.constant 0 : index
    %6 = vector.load %arg4[%c0_5, %c0_6] : memref<8x1xf32, #tpu.memory_space<vmem>>, vector<8x1xf32>
    %7 = vector.broadcast %6 : vector<8x1xf32> to vector<8x128xf32>
    %8 = arith.mulf %5, %7 : vector<8x128xf32>
    %c0_7 = arith.constant 0 : index
    %c0_8 = arith.constant 0 : index
    %9 = vector.load %arg5[%c0_7, %c0_8] : memref<8x1xf32, #tpu.memory_space<vmem>>, vector<8x1xf32>
    %10 = vector.broadcast %9 : vector<8x1xf32> to vector<8x128xf32>
    %11 = arith.addf %8, %10 : vector<8x128xf32>
    %cst_9 = arith.constant 0.000000e+00 : f32
    %12 = vector.broadcast %cst_9 : f32 to vector<8x128xf32>
    %13 = arith.maximumf %11, %12 : vector<8x128xf32>
    %c0_10 = arith.constant 0 : index
    %c0_11 = arith.constant 0 : index
    %14 = vector.load %arg6[%c0_10, %c0_11] : memref<128x2xf32, #tpu.memory_space<vmem>>, vector<128x2xf32>
    %cst_12 = arith.constant dense<0.000000e+00> : vector<8x2xf32>
    %15 = tpu.matmul %13, %14, %cst_12 {dimension_numbers = #tpu.dot_dimension_numbers<[1], [0], [0], [1], [0, 0, 1, 1], [], []>} : vector<8x128xf32>, vector<128x2xf32>, vector<8x2xf32> -> vector<8x2xf32>
    %c0_13 = arith.constant 0 : index
    %c0_14 = arith.constant 0 : index
    %16 = vector.load %arg7[%c0_13, %c0_14] : memref<8x2xf32, #tpu.memory_space<vmem>>, vector<8x2xf32>
    tpu.vector_store %arg7[%c0_13, %c0_14], %15 {strides = array<i32>} : memref<8x2xf32, #tpu.memory_space<vmem>>, vector<8x2xf32>,
    return
  }
  func.func @transform_0(%arg0: i32) -> (i32, i32) {
    %c0_i32 = arith.constant 0 : i32
    %c0_i32_0 = arith.constant 0 : i32
    %c0_i32_1 = arith.constant 0 : i32
    return %c0_i32, %c0_i32_0 : i32, i32
  }
  func.func @transform_1(%arg0: i32) -> (i32, i32) {
    %c0_i32 = arith.constant 0 : i32
    %c0_i32_0 = arith.constant 0 : i32
    %c0_i32_1 = arith.constant 0 : i32
    return %c0_i32, %c0_i32_0 : i32, i32
  }
  func.func @transform_2(%arg0: i32) -> (i32, i32) {
    %c0_i32 = arith.constant 0 : i32
    %c0_i32_0 = arith.constant 0 : i32
    %c0_i32_1 = arith.constant 0 : i32
    return %c0_i32, %c0_i32_0 : i32, i32
  }
  func.func @transform_3(%arg0: i32) -> (i32, i32) {
    %c0_i32 = arith.constant 0 : i32
    %c0_i32_0 = arith.constant 0 : i32
    %c0_i32_1 = arith.constant 0 : i32
    return %c0_i32, %c0_i32_0 : i32, i32
  }
  func.func @transform_4(%arg0: i32) -> (i32, i32) {
    %c0_i32 = arith.constant 0 : i32
    %c0_i32_0 = arith.constant 0 : i32
    %c0_i32_1 = arith.constant 0 : i32
    return %c0_i32, %c0_i32_0 : i32, i32
  }
  func.func @transform_5(%arg0: i32) -> (i32, i32) {
    %c0_i32 = arith.constant 0 : i32
    %c0_i32_0 = arith.constant 0 : i32
    %c0_i32_1 = arith.constant 0 : i32
    return %c0_i32, %c0_i32_0 : i32, i32
  }
  func.func @transform_6(%arg0: i32) -> (i32, i32) {
    %c0_i32 = arith.constant 0 : i32
    %c0_i32_0 = arith.constant 0 : i32
    %c0_i32_1 = arith.constant 0 : i32
    return %c0_i32, %c0_i32_0 : i32, i32
  }
}

</mosaic_0001>

<llo_original>
// kernel: s2cnn_feature_forward.2
$region0: #{s2cnn_feature_forward.2}
  #allocation0 [shape = 'u32[]', space=smem, size = 0x4, offset = 0x4, fixed_abs, tag = 'smem constant byte address 0x4 - core index']
  #allocation1 [shape = 'u32[144,128]{1,0:T(1,128)}', space=vmem, size = 0x12000, scoped, tag = 'internal scratch']
  %s0 = inlined_call_operand.vmem [shape: f32[16,1024], index: 0, kind: input, shape index: {}]
  %s1 = inlined_call_operand.vmem [shape: f32[8,16], index: 1, kind: input, shape index: {}]
  %s2 = inlined_call_operand.vmem [shape: f32[8,1], index: 2, kind: input, shape index: {}]
  %s3 = inlined_call_operand.vmem [shape: f32[8,1], index: 3, kind: input, shape index: {}]
  %s4 = inlined_call_operand.vmem [shape: f32[8,1], index: 4, kind: input, shape index: {}]
  %s5 = inlined_call_operand.vmem [shape: f32[8,1024], index: 5, kind: output, shape index: {}]
  %s6 = sld [smem:[#allocation0]]
  $region30: #{s2cnn_feature_forward.2} parent=0
    _
  %s8 = ssub.s32 1, %s6
  %s9 = scalar_select 0, %s8, %s6
  // Predicated region
  $region2: #{s2cnn_feature_forward.2} parent=0 // pred_check
    _
  $region3: #{s2cnn_feature_forward.2} parent=0 // pred_check_branch
    %11 = sbr.rel (0) target = $region5
  $region4: #{s2cnn_feature_forward.2} parent=0 // pred_region
    _
  $region5: #{s2cnn_feature_forward.2} parent=0 // pred_fallthru
    _
  // Predicated region
  $region6: #{s2cnn_feature_forward.2} parent=0 // pred_check
    _
  $region7: #{s2cnn_feature_forward.2} parent=0 // pred_check_branch
    %13 = sbr.rel (0) target = $region9
  $region8: #{s2cnn_feature_forward.2} parent=0 // pred_region
    _
  $region9: #{s2cnn_feature_forward.2} parent=0 // pred_fallthru
    _
  // Predicated region
  $region10: #{s2cnn_feature_forward.2} parent=0 // pred_check
    _
  $region11: #{s2cnn_feature_forward.2} parent=0 // pred_check_branch
    %15 = sbr.rel (0) target = $region13
  $region12: #{s2cnn_feature_forward.2} parent=0 // pred_region
    _
  $region13: #{s2cnn_feature_forward.2} parent=0 // pred_fallthru
    _
  // Predicated region
  $region14: #{s2cnn_feature_forward.2} parent=0 // pred_check
    _
  $region15: #{s2cnn_feature_forward.2} parent=0 // pred_check_branch
    %17 = sbr.rel (0) target = $region17
  $region16: #{s2cnn_feature_forward.2} parent=0 // pred_region
    _
  $region17: #{s2cnn_feature_forward.2} parent=0 // pred_fallthru
    _
  // Predicated region
  $region18: #{s2cnn_feature_forward.2} parent=0 // pred_check
    _
  $region19: #{s2cnn_feature_forward.2} parent=0 // pred_check_branch
    %19 = sbr.rel (0) target = $region21
  $region20: #{s2cnn_feature_forward.2} parent=0 // pred_region
    _
  $region21: #{s2cnn_feature_forward.2} parent=0 // pred_fallthru
    _
  %v20 = vld [vmem:[%s1] sm:$0xff]
  %v21 = vld [vmem:[%s0] sm:$0xff]
  %v22 = vld [vmem:[%s0 + $0x8] sm:$0xff]
  %v23 = vld [vmem:[%s0 + $0x10] sm:$0xff]
  %v24 = vld [vmem:[%s0 + $0x18] sm:$0xff]
  %v25 = vld [vmem:[%s0 + $0x20] sm:$0xff]
  %v26 = vld [vmem:[%s0 + $0x28] sm:$0xff]
  %v27 = vld [vmem:[%s0 + $0x30] sm:$0xff]
  %v28 = vld [vmem:[%s0 + $0x38] sm:$0xff]
  %v29 = vld [vmem:[%s0 + $0x40] sm:$0xff]
  %v30 = vld [vmem:[%s0 + $0x48] sm:$0xff]
  %v31 = vld [vmem:[%s0 + $0x50] sm:$0xff]
  %v32 = vld [vmem:[%s0 + $0x58] sm:$0xff]
  %v33 = vld [vmem:[%s0 + $0x60] sm:$0xff]
  %v34 = vld [vmem:[%s0 + $0x68] sm:$0xff]
  %v35 = vld [vmem:[%s0 + $0x70] sm:$0xff]
  %v36 = vld [vmem:[%s0 + $0x78] sm:$0xff]
  %v37 = vld [vmem:[%s2] sm:$0xff]
  %39 = vset.pattern.permute.xlu0 0
  %40 = vperm.xlu0 %39, %v37
  %v41 = vpop.permute.xlu0 %40
  %vm43 = vcmask 130048
  %v45 = vsel %vm43, %v20, 0
  %47 = vmatprep.subr.mxu0 0.0
  %48 = vmatpush1.msra.mxu0 0.0
  %49 = vmatprep.subr.mxu0 0.0
  %50 = vmatpush1.msra.mxu0 0.0
  %51 = vmatprep.subr.mxu0 0.0
  %52 = vmatpush1.msra.mxu0 0.0
  %53 = vmatprep.subr.mxu0 0.0
  %54 = vmatpush1.msra.mxu0 0.0
  %55 = vmatprep.subr.mxu0 0.0
  %56 = vmatpush1.msra.mxu0 0.0
  %57 = vmatprep.subr.mxu0 0.0
  %58 = vmatpush1.msra.mxu0 0.0
  %59 = vmatprep.subr.mxu0 0.0
  %60 = vmatpush1.msra.mxu0 0.0
  %61 = vmatprep.subr.mxu0 0.0
  %62 = vmatpush1.msra.mxu0 0.0
  %63 = vmatprep.subr.mxu0 0.0
  %64 = vmatpush1.msra.mxu0 0.0
  %65 = vmatprep.subr.mxu0 0.0
  %66 = vmatpush1.msra.mxu0 0.0
  %67 = vmatprep.subr.mxu0 0.0
  %68 = vmatpush1.msra.mxu0 0.0
  %69 = vmatprep.subr.mxu0 0.0
  %70 = vmatpush1.msra.mxu0 0.0
  %71 = vmatprep.subr.mxu0 0.0
  %72 = vmatpush1.msra.mxu0 0.0
  %73 = vmatprep.subr.mxu0 0.0
  %74 = vmatpush1.msra.mxu0 0.0
  %75 = vmatprep.subr.mxu0 %v30
  %76 = vmatpush1.msra.mxu0 %v29
  %77 = vmatprep.subr.mxu0 %v22
  %78 = vmatpush1.msra.mxu0 %v21
  %79 = vmatprep.subr.mxu0 0.0
  %80 = vmatpush2.msra.mxu0 0.0
  %81 = vmatprep.subr.mxu0 0.0
  %82 = vmatpush2.msra.mxu0 0.0
  %83 = vmatprep.subr.mxu0 0.0
  %84 = vmatpush2.msra.mxu0 0.0
  %85 = vmatprep.subr.mxu0 0.0
  %86 = vmatpush2.msra.mxu0 0.0
  %87 = vmatprep.subr.mxu0 0.0
  %88 = vmatpush2.msra.mxu0 0.0
  %89 = vmatprep.subr.mxu0 0.0
  %90 = vmatpush2.msra.mxu0 0.0
  %91 = vmatprep.subr.mxu0 0.0
  %92 = vmatpush2.msra.mxu0 0.0
  %93 = vmatprep.subr.mxu0 0.0
  %94 = vmatpush2.msra.mxu0 0.0
  %95 = vmatprep.subr.mxu0 0.0
  %96 = vmatpush2.msra.mxu0 0.0
  %97 = vmatprep.subr.mxu0 0.0
  %98 = vmatpush2.msra.mxu0 0.0
  %99 = vmatprep.subr.mxu0 0.0
  %100 = vmatpush2.msra.mxu0 0.0
  %101 = vmatprep.subr.mxu0 0.0
  %102 = vmatpush2.msra.mxu0 0.0
  %103 = vmatprep.subr.mxu0 0.0
  %104 = vmatpush2.msra.mxu0 0.0
  %105 = vmatprep.subr.mxu0 0.0
  %106 = vmatpush2.msra.mxu0 0.0
  %107 = vmatprep.subr.mxu0 0.0
  %108 = vmatpush2.msra.mxu0 0.0
  %109 = vmatprep.subr.mxu0 0.0
  %110 = vmatpush2.msra.mxu0 0.0
  %111 = vmatprep.mubr.f32.mxu0 0.0
  %112 = vmatmul.mubr.f32.gmra.mxu0 %v45
  %v113 = vpop.f32.mrf.mxu0
  %v114 = vadd.f32 %v41, %v113
  %v115 = vpop.f32.mrf.mxu0
  %v116 = vadd.f32 %v41, %v115
  %117 = vdwg.mxu0
  %118 = vmatprep.subr.mxu0 0.0
  %119 = vmatpush1.msra.mxu0 0.0
  %120 = vmatprep.subr.mxu0 0.0
  %121 = vmatpush1.msra.mxu0 0.0
  %122 = vmatprep.subr.mxu0 0.0
  %123 = vmatpush1.msra.mxu0 0.0
  %124 = vmatprep.subr.mxu0 0.0
  %125 = vmatpush1.msra.mxu0 0.0
  %126 = vmatprep.subr.mxu0 0.0
  %127 = vmatpush1.msra.mxu0 0.0
  %128 = vmatprep.subr.mxu0 0.0
  %129 = vmatpush1.msra.mxu0 0.0
  %130 = vmatprep.subr.mxu0 0.0
  %131 = vmatpush1.msra.mxu0 0.0
  %132 = vmatprep.subr.mxu0 0.0
  %133 = vmatpush1.msra.mxu0 0.0
  %134 = vmatprep.subr.mxu0 0.0
  %135 = vmatpush1.msra.mxu0 0.0
  %136 = vmatprep.subr.mxu0 0.0
  %137 = vmatpush1.msra.mxu0 0.0
  %138 = vmatprep.subr.mxu0 0.0
  %139 = vmatpush1.msra.mxu0 0.0
  %140 = vmatprep.subr.mxu0 0.0
  %141 = vmatpush1.msra.mxu0 0.0
  %142 = vmatprep.subr.mxu0 0.0
  %143 = vmatpush1.msra.mxu0 0.0
  %144 = vmatprep.subr.mxu0 0.0
  %145 = vmatpush1.msra.mxu0 0.0
  %146 = vmatprep.subr.mxu0 %v32
  %147 = vmatpush1.msra.mxu0 %v31
  %148 = vmatprep.subr.mxu0 %v24
  %149 = vmatpush1.msra.mxu0 %v23
  %150 = vmatprep.subr.mxu0 0.0
  %151 = vmatpush2.msra.mxu0 0.0
  %152 = vmatprep.subr.mxu0 0.0
  %153 = vmatpush2.msra.mxu0 0.0
  %154 = vmatprep.subr.mxu0 0.0
  %155 = vmatpush2.msra.mxu0 0.0
  %156 = vmatprep.subr.mxu0 0.0
  %157 = vmatpush2.msra.mxu0 0.0
  %158 = vmatprep.subr.mxu0 0.0
  %159 = vmatpush2.msra.mxu0 0.0
  %160 = vmatprep.subr.mxu0 0.0
  %161 = vmatpush2.msra.mxu0 0.0
  %162 = vmatprep.subr.mxu0 0.0
  %163 = vmatpush2.msra.mxu0 0.0
  %164 = vmatprep.subr.mxu0 0.0
  %165 = vmatpush2.msra.mxu0 0.0
  %166 = vmatprep.subr.mxu0 0.0
  %167 = vmatpush2.msra.mxu0 0.0
  %168 = vmatprep.subr.mxu0 0.0
  %169 = vmatpush2.msra.mxu0 0.0
  %170 = vmatprep.subr.mxu0 0.0
  %171 = vmatpush2.msra.mxu0 0.0
  %172 = vmatprep.subr.mxu0 0.0
  %173 = vmatpush2.msra.mxu0 0.0
  %174 = vmatprep.subr.mxu0 0.0
  %175 = vmatpush2.msra.mxu0 0.0
  %176 = vmatprep.subr.mxu0 0.0
  %177 = vmatpush2.msra.mxu0 0.0
  %178 = vmatprep.subr.mxu0 0.0
  %179 = vmatpush2.msra.mxu0 0.0
  %180 = vmatprep.subr.mxu0 0.0
  %181 = vmatpush2.msra.mxu0 0.0
  %182 = vmatprep.mubr.f32.mxu0 0.0
  %183 = vmatmul.mubr.f32.gmra.mxu0 %v45
  %v184 = vpop.f32.mrf.mxu0
  %v185 = vadd.f32 %v41, %v184
  %v186 = vpop.f32.mrf.mxu0
  %v187 = vadd.f32 %v41, %v186
  %188 = vdwg.mxu0
  %189 = vmatprep.subr.mxu0 0.0
  %190 = vmatpush1.msra.mxu0 0.0
  %191 = vmatprep.subr.mxu0 0.0
  %192 = vmatpush1.msra.mxu0 0.0
  %193 = vmatprep.subr.mxu0 0.0
  %194 = vmatpush1.msra.mxu0 0.0
  %195 = vmatprep.subr.mxu0 0.0
  %196 = vmatpush1.msra.mxu0 0.0
  %197 = vmatprep.subr.mxu0 0.0
  %198 = vmatpush1.msra.mxu0 0.0
  %199 = vmatprep.subr.mxu0 0.0
  %200 = vmatpush1.msra.mxu0 0.0
  %201 = vmatprep.subr.mxu0 0.0
  %202 = vmatpush1.msra.mxu0 0.0
  %203 = vmatprep.subr.mxu0 0.0
  %204 = vmatpush1.msra.mxu0 0.0
  %205 = vmatprep.subr.mxu0 0.0
  %206 = vmatpush1.msra.mxu0 0.0
  %207 = vmatprep.subr.mxu0 0.0
  %208 = vmatpush1.msra.mxu0 0.0
  %209 = vmatprep.subr.mxu0 0.0
  %210 = vmatpush1.msra.mxu0 0.0
  %211 = vmatprep.subr.mxu0 0.0
  %212 = vmatpush1.msra.mxu0 0.0
  %213 = vmatprep.subr.mxu0 0.0
  %214 = vmatpush1.msra.mxu0 0.0
  %215 = vmatprep.subr.mxu0 0.0
  %216 = vmatpush1.msra.mxu0 0.0
  %217 = vmatprep.subr.mxu0 %v34
  %218 = vmatpush1.msra.mxu0 %v33
  %219 = vmatprep.subr.mxu0 %v26
  %220 = vmatpush1.msra.mxu0 %v25
  %221 = vmatprep.subr.mxu0 0.0
  %222 = vmatpush2.msra.mxu0 0.0
  %223 = vmatprep.subr.mxu0 0.0
  %224 = vmatpush2.msra.mxu0 0.0
  %225 = vmatprep.subr.mxu0 0.0
  %226 = vmatpush2.msra.mxu0 0.0
  %227 = vmatprep.subr.mxu0 0.0
  %228 = vmatpush2.msra.mxu0 0.0
  %229 = vmatprep.subr.mxu0 0.0
  %230 = vmatpush2.msra.mxu0 0.0
  %231 = vmatprep.subr.mxu0 0.0
  %232 = vmatpush2.msra.mxu0 0.0
  %233 = vmatprep.subr.mxu0 0.0
  %234 = vmatpush2.msra.mxu0 0.0
  %235 = vmatprep.subr.mxu0 0.0
  %236 = vmatpush2.msra.mxu0 0.0
  %237 = vmatprep.subr.mxu0 0.0
  %238 = vmatpush2.msra.mxu0 0.0
  %239 = vmatprep.subr.mxu0 0.0
  %240 = vmatpush2.msra.mxu0 0.0
  %241 = vmatprep.subr.mxu0 0.0
  %242 = vmatpush2.msra.mxu0 0.0
  %243 = vmatprep.subr.mxu0 0.0
  %244 = vmatpush2.msra.mxu0 0.0
  %245 = vmatprep.subr.mxu0 0.0
  %246 = vmatpush2.msra.mxu0 0.0
  %247 = vmatprep.subr.mxu0 0.0
  %248 = vmatpush2.msra.mxu0 0.0
  %249 = vmatprep.subr.mxu0 0.0
  %250 = vmatpush2.msra.mxu0 0.0
  %251 = vmatprep.subr.mxu0 0.0
  %252 = vmatpush2.msra.mxu0 0.0
  %253 = vmatprep.mubr.f32.mxu0 0.0
  %254 = vmatmul.mubr.f32.gmra.mxu0 %v45
  %v255 = vpop.f32.mrf.mxu0
  %v256 = vadd.f32 %v41, %v255
  %v257 = vpop.f32.mrf.mxu0
  %v258 = vadd.f32 %v41, %v257
  %259 = vdwg.mxu0
  %260 = vmatprep.subr.mxu0 0.0
  %261 = vmatpush1.msra.mxu0 0.0
  %262 = vmatprep.subr.mxu0 0.0
  %263 = vmatpush1.msra.mxu0 0.0
  %264 = vmatprep.subr.mxu0 0.0
  %265 = vmatpush1.msra.mxu0 0.0
  %266 = vmatprep.subr.mxu0 0.0
  %267 = vmatpush1.msra.mxu0 0.0
  %268 = vmatprep.subr.mxu0 0.0
  %269 = vmatpush1.msra.mxu0 0.0
  %270 = vmatprep.subr.mxu0 0.0
  %271 = vmatpush1.msra.mxu0 0.0
  %272 = vmatprep.subr.mxu0 0.0
  %273 = vmatpush1.msra.mxu0 0.0
  %274 = vmatprep.subr.mxu0 0.0
  %275 = vmatpush1.msra.mxu0 0.0
  %276 = vmatprep.subr.mxu0 0.0
  %277 = vmatpush1.msra.mxu0 0.0
  %278 = vmatprep.subr.mxu0 0.0
  %279 = vmatpush1.msra.mxu0 0.0
  %280 = vmatprep.subr.mxu0 0.0
  %281 = vmatpush1.msra.mxu0 0.0
  %282 = vmatprep.subr.mxu0 0.0
  %283 = vmatpush1.msra.mxu0 0.0
  %284 = vmatprep.subr.mxu0 0.0
  %285 = vmatpush1.msra.mxu0 0.0
  %286 = vmatprep.subr.mxu0 0.0
  %287 = vmatpush1.msra.mxu0 0.0
  %288 = vmatprep.subr.mxu0 %v36
  %289 = vmatpush1.msra.mxu0 %v35
  %290 = vmatprep.subr.mxu0 %v28
  %291 = vmatpush1.msra.mxu0 %v27
  %292 = vmatprep.subr.mxu0 0.0
  %293 = vmatpush2.msra.mxu0 0.0
  %294 = vmatprep.subr.mxu0 0.0
  %295 = vmatpush2.msra.mxu0 0.0
  %296 = vmatprep.subr.mxu0 0.0
  %297 = vmatpush2.msra.mxu0 0.0
  %298 = vmatprep.subr.mxu0 0.0
  %299 = vmatpush2.msra.mxu0 0.0
  %300 = vmatprep.subr.mxu0 0.0
  %301 = vmatpush2.msra.mxu0 0.0
  %302 = vmatprep.subr.mxu0 0.0
  %303 = vmatpush2.msra.mxu0 0.0
  %304 = vmatprep.subr.mxu0 0.0
  %305 = vmatpush2.msra.mxu0 0.0
  %306 = vmatprep.subr.mxu0 0.0
  %307 = vmatpush2.msra.mxu0 0.0
  %308 = vmatprep.subr.mxu0 0.0
  %309 = vmatpush2.msra.mxu0 0.0
  %310 = vmatprep.subr.mxu0 0.0
  %311 = vmatpush2.msra.mxu0 0.0
  %312 = vmatprep.subr.mxu0 0.0
  %313 = vmatpush2.msra.mxu0 0.0
  %314 = vmatprep.subr.mxu0 0.0
  %315 = vmatpush2.msra.mxu0 0.0
  %316 = vmatprep.subr.mxu0 0.0
  %317 = vmatpush2.msra.mxu0 0.0
  %318 = vmatprep.subr.mxu0 0.0
  %319 = vmatpush2.msra.mxu0 0.0
  %320 = vmatprep.subr.mxu0 0.0
  %321 = vmatpush2.msra.mxu0 0.0
  %322 = vmatprep.subr.mxu0 0.0
  %323 = vmatpush2.msra.mxu0 0.0
  %324 = vmatprep.mubr.f32.mxu0 0.0
  %325 = vmatmul.mubr.f32.gmra.mxu0 %v45
  %v326 = vpop.f32.mrf.mxu0
  %v327 = vadd.f32 %v41, %v326
  %v328 = vpop.f32.mrf.mxu0
  %v329 = vadd.f32 %v41, %v328
  %330 = vdwg.mxu0
  %v331 = vld [vmem:[%s3] sm:$0xff]
  %333 = vset.pattern.permute.xlu0 0
  %334 = vperm.xlu0 %333, %v331
  %v335 = vpop.permute.xlu0 %334
  %v337 = vmul.f32 %v114, %v335
  %v338 = vmul.f32 %v116, %v335
  %v339 = vmul.f32 %v185, %v335
  %v340 = vmul.f32 %v187, %v335
  %v341 = vmul.f32 %v256, %v335
  %v342 = vmul.f32 %v258, %v335
  %v343 = vmul.f32 %v327, %v335
  %v344 = vmul.f32 %v329, %v335
  %v345 = vld [vmem:[%s4] sm:$0xff]
  %347 = vset.pattern.permute.xlu0 0
  %348 = vperm.xlu0 %347, %v345
  %v349 = vpop.permute.xlu0 %348
  %v351 = vadd.f32 %v337, %v349
  %v352 = vadd.f32 %v338, %v349
  %v353 = vadd.f32 %v339, %v349
  %v354 = vadd.f32 %v340, %v349
  %v355 = vadd.f32 %v341, %v349
  %v356 = vadd.f32 %v342, %v349
  %v357 = vadd.f32 %v343, %v349
  %v358 = vadd.f32 %v344, %v349
  %v359 = vmax.f32 %v351, 0.0
  %v360 = vmax.f32 %v352, 0.0
  %v361 = vmax.f32 %v353, 0.0
  %v362 = vmax.f32 %v354, 0.0
  %v363 = vmax.f32 %v355, 0.0
  %v364 = vmax.f32 %v356, 0.0
  %v365 = vmax.f32 %v357, 0.0
  %v366 = vmax.f32 %v358, 0.0
  %367 = vst [vmem:[%s5] sm:$0xff] %v359
  %368 = vst [vmem:[%s5 + $0x8] sm:$0xff] %v360
  %369 = vst [vmem:[%s5 + $0x10] sm:$0xff] %v361
  %370 = vst [vmem:[%s5 + $0x18] sm:$0xff] %v362
  %371 = vst [vmem:[%s5 + $0x20] sm:$0xff] %v363
  %372 = vst [vmem:[%s5 + $0x28] sm:$0xff] %v364
  %373 = vst [vmem:[%s5 + $0x30] sm:$0xff] %v365
  %374 = vst [vmem:[%s5 + $0x38] sm:$0xff] %v366
  // Predicated region
  $region22: #{s2cnn_feature_forward.2} parent=0 // pred_check
    _
  $region23: #{s2cnn_feature_forward.2} parent=0 // pred_check_branch
    %376 = sbr.rel (0) target = $region25
  $region24: #{s2cnn_feature_forward.2} parent=0 // pred_region
    _
  $region25: #{s2cnn_feature_forward.2} parent=0 // pred_fallthru
    _
  // Predicated region
  $region26: #{s2cnn_feature_forward.2} parent=0 // pred_check
    _
  $region27: #{s2cnn_feature_forward.2} parent=0 // pred_check_branch
    %378 = sbr.rel (0) target = $region29
  $region28: #{s2cnn_feature_forward.2} parent=0 // pred_region
    _
  $region29: #{s2cnn_feature_forward.2} parent=0 // pred_fallthru
    _

// kernel: s2cnn_feature_forward.3
$region0: #{s2cnn_feature_forward.3}
  #allocation0 [shape = 'u32[]', space=smem, size = 0x4, offset = 0x4, fixed_abs, tag = 'smem constant byte address 0x4 - core index']
  #allocation1 [shape = 'u32[144,128]{1,0:T(1,128)}', space=vmem, size = 0x12000, scoped, tag = 'internal scratch']
  %s0 = inlined_call_operand.vmem [shape: f32[64,128], index: 0, kind: input, shape index: {}]
  %s1 = inlined_call_operand.vmem [shape: f32[8,64], index: 1, kind: input, shape index: {}]
  %s2 = inlined_call_operand.vmem [shape: f32[8,1], index: 2, kind: input, shape index: {}]
  %s3 = inlined_call_operand.vmem [shape: f32[8,1], index: 3, kind: input, shape index: {}]
  %s4 = inlined_call_operand.vmem [shape: f32[8,1], index: 4, kind: input, shape index: {}]
  %s5 = inlined_call_operand.vmem [shape: f32[128,2], index: 5, kind: input, shape index: {}]
  %s6 = inlined_call_operand.vmem [shape: f32[8,2], index: 6, kind: output, shape index: {}]
  %s7 = sld [smem:[#allocation0]]
  $region34: #{s2cnn_feature_forward.3} parent=0
    _
  %s9 = ssub.s32 1, %s7
  %s10 = scalar_select 0, %s9, %s7
  // Predicated region
  $region2: #{s2cnn_feature_forward.3} parent=0 // pred_check
    _
  $region3: #{s2cnn_feature_forward.3} parent=0 // pred_check_branch
    %12 = sbr.rel (0) target = $region5
  $region4: #{s2cnn_feature_forward.3} parent=0 // pred_region
    _
  $region5: #{s2cnn_feature_forward.3} parent=0 // pred_fallthru
    _
  // Predicated region
  $region6: #{s2cnn_feature_forward.3} parent=0 // pred_check
    _
  $region7: #{s2cnn_feature_forward.3} parent=0 // pred_check_branch
    %14 = sbr.rel (0) target = $region9
  $region8: #{s2cnn_feature_forward.3} parent=0 // pred_region
    _
  $region9: #{s2cnn_feature_forward.3} parent=0 // pred_fallthru
    _
  // Predicated region
  $region10: #{s2cnn_feature_forward.3} parent=0 // pred_check
    _
  $region11: #{s2cnn_feature_forward.3} parent=0 // pred_check_branch
    %16 = sbr.rel (0) target = $region13
  $region12: #{s2cnn_feature_forward.3} parent=0 // pred_region
    _
  $region13: #{s2cnn_feature_forward.3} parent=0 // pred_fallthru
    _
  // Predicated region
  $region14: #{s2cnn_feature_forward.3} parent=0 // pred_check
    _
  $region15: #{s2cnn_feature_forward.3} parent=0 // pred_check_branch
    %18 = sbr.rel (0) target = $region17
  $region16: #{s2cnn_feature_forward.3} parent=0 // pred_region
    _
  $region17: #{s2cnn_feature_forward.3} parent=0 // pred_fallthru
    _
  // Predicated region
  $region18: #{s2cnn_feature_forward.3} parent=0 // pred_check
    _
  $region19: #{s2cnn_feature_forward.3} parent=0 // pred_check_branch
    %20 = sbr.rel (0) target = $region21
  $region20: #{s2cnn_feature_forward.3} parent=0 // pred_region
    _
  $region21: #{s2cnn_feature_forward.3} parent=0 // pred_fallthru
    _
  // Predicated region
  $region22: #{s2cnn_feature_forward.3} parent=0 // pred_check
    _
  $region23: #{s2cnn_feature_forward.3} parent=0 // pred_check_branch
    %22 = sbr.rel (0) target = $region25
  $region24: #{s2cnn_feature_forward.3} parent=0 // pred_region
    _
  $region25: #{s2cnn_feature_forward.3} parent=0 // pred_fallthru
    _
  %v23 = vld [vmem:[%s1] sm:$0xff]
  %v24 = vld [vmem:[%s0] sm:$0xff]
  %v25 = vld [vmem:[%s0 + $0x8] sm:$0xff]
  %v26 = vld [vmem:[%s0 + $0x10] sm:$0xff]
  %v27 = vld [vmem:[%s0 + $0x18] sm:$0xff]
  %v28 = vld [vmem:[%s0 + $0x20] sm:$0xff]
  %v29 = vld [vmem:[%s0 + $0x28] sm:$0xff]
  %v30 = vld [vmem:[%s0 + $0x30] sm:$0xff]
  %v31 = vld [vmem:[%s0 + $0x38] sm:$0xff]
  %v32 = vld [vmem:[%s2] sm:$0xff]
  %34 = vset.pattern.permute.xlu0 0
  %35 = vperm.xlu0 %34, %v32
  %v36 = vpop.permute.xlu0 %35
  %vm38 = vcmask 523264
  %v40 = vsel %vm38, %v23, 0
  %42 = vmatprep.subr.mxu0 0.0
  %43 = vmatpush1.msra.mxu0 0.0
  %44 = vmatprep.subr.mxu0 0.0
  %45 = vmatpush1.msra.mxu0 0.0
  %46 = vmatprep.subr.mxu0 0.0
  %47 = vmatpush1.msra.mxu0 0.0
  %48 = vmatprep.subr.mxu0 0.0
  %49 = vmatpush1.msra.mxu0 0.0
  %50 = vmatprep.subr.mxu0 0.0
  %51 = vmatpush1.msra.mxu0 0.0
  %52 = vmatprep.subr.mxu0 0.0
  %53 = vmatpush1.msra.mxu0 0.0
  %54 = vmatprep.subr.mxu0 0.0
  %55 = vmatpush1.msra.mxu0 0.0
  %56 = vmatprep.subr.mxu0 0.0
  %57 = vmatpush1.msra.mxu0 0.0
  %58 = vmatprep.subr.mxu0 0.0
  %59 = vmatpush1.msra.mxu0 %v31
  %60 = vmatprep.subr.mxu0 0.0
  %61 = vmatpush1.msra.mxu0 %v30
  %62 = vmatprep.subr.mxu0 0.0
  %63 = vmatpush1.msra.mxu0 %v29
  %64 = vmatprep.subr.mxu0 0.0
  %65 = vmatpush1.msra.mxu0 %v28
  %66 = vmatprep.subr.mxu0 0.0
  %67 = vmatpush1.msra.mxu0 %v27
  %68 = vmatprep.subr.mxu0 0.0
  %69 = vmatpush1.msra.mxu0 %v26
  %70 = vmatprep.subr.mxu0 0.0
  %71 = vmatpush1.msra.mxu0 %v25
  %72 = vmatprep.subr.mxu0 0.0
  %73 = vmatpush1.msra.mxu0 %v24
  %74 = vmatprep.subr.mxu0 0.0
  %75 = vmatpush2.msra.mxu0 0.0
  %76 = vmatprep.subr.mxu0 0.0
  %77 = vmatpush2.msra.mxu0 0.0
  %78 = vmatprep.subr.mxu0 0.0
  %79 = vmatpush2.msra.mxu0 0.0
  %80 = vmatprep.subr.mxu0 0.0
  %81 = vmatpush2.msra.mxu0 0.0
  %82 = vmatprep.subr.mxu0 0.0
  %83 = vmatpush2.msra.mxu0 0.0
  %84 = vmatprep.subr.mxu0 0.0
  %85 = vmatpush2.msra.mxu0 0.0
  %86 = vmatprep.subr.mxu0 0.0
  %87 = vmatpush2.msra.mxu0 0.0
  %88 = vmatprep.subr.mxu0 0.0
  %89 = vmatpush2.msra.mxu0 0.0
  %90 = vmatprep.subr.mxu0 0.0
  %91 = vmatpush2.msra.mxu0 0.0
  %92 = vmatprep.subr.mxu0 0.0
  %93 = vmatpush2.msra.mxu0 0.0
  %94 = vmatprep.subr.mxu0 0.0
  %95 = vmatpush2.msra.mxu0 0.0
  %96 = vmatprep.subr.mxu0 0.0
  %97 = vmatpush2.msra.mxu0 0.0
  %98 = vmatprep.subr.mxu0 0.0
  %99 = vmatpush2.msra.mxu0 0.0
  %100 = vmatprep.subr.mxu0 0.0
  %101 = vmatpush2.msra.mxu0 0.0
  %102 = vmatprep.subr.mxu0 0.0
  %103 = vmatpush2.msra.mxu0 0.0
  %104 = vmatprep.subr.mxu0 0.0
  %105 = vmatpush2.msra.mxu0 0.0
  %106 = vmatprep.mubr.f32.mxu0 0.0
  %107 = vmatmul.mubr.f32.gmra.mxu0 %v40
  %v108 = vpop.f32.mrf.mxu0
  %v109 = vadd.f32 %v36, %v108
  %v110 = vpop.f32.mrf.mxu0
  %111 = vdwg.mxu0
  %v112 = vld [vmem:[%s3] sm:$0xff]
  %114 = vset.pattern.permute.xlu0 0
  %115 = vperm.xlu0 %114, %v112
  %v116 = vpop.permute.xlu0 %115
  %v118 = vmul.f32 %v109, %v116
  %v119 = vld [vmem:[%s4] sm:$0xff]
  %121 = vset.pattern.permute.xlu0 0
  %122 = vperm.xlu0 %121, %v119
  %v123 = vpop.permute.xlu0 %122
  %v125 = vadd.f32 %v118, %v123
  %v126 = vmax.f32 %v125, 0.0
  %v127 = vld [vmem:[%s5] sm:$0xff]
  %v128 = vld [vmem:[%s5 + $0x8] sm:$0xff]
  %v129 = vld [vmem:[%s5 + $0x10] sm:$0xff]
  %v130 = vld [vmem:[%s5 + $0x18] sm:$0xff]
  %v131 = vld [vmem:[%s5 + $0x20] sm:$0xff]
  %v132 = vld [vmem:[%s5 + $0x28] sm:$0xff]
  %v133 = vld [vmem:[%s5 + $0x30] sm:$0xff]
  %v134 = vld [vmem:[%s5 + $0x38] sm:$0xff]
  %v135 = vld [vmem:[%s5 + $0x40] sm:$0xff]
  %v136 = vld [vmem:[%s5 + $0x48] sm:$0xff]
  %v137 = vld [vmem:[%s5 + $0x50] sm:$0xff]
  %v138 = vld [vmem:[%s5 + $0x58] sm:$0xff]
  %v139 = vld [vmem:[%s5 + $0x60] sm:$0xff]
  %v140 = vld [vmem:[%s5 + $0x68] sm:$0xff]
  %v141 = vld [vmem:[%s5 + $0x70] sm:$0xff]
  %v142 = vld [vmem:[%s5 + $0x78] sm:$0xff]
  %143 = vmatprep.subr.mxu0 0.0
  %144 = vmatpush1.msra.mxu0 %v142
  %145 = vmatprep.subr.mxu0 0.0
  %146 = vmatpush1.msra.mxu0 %v141
  %147 = vmatprep.subr.mxu0 0.0
  %148 = vmatpush1.msra.mxu0 %v140
  %149 = vmatprep.subr.mxu0 0.0
  %150 = vmatpush1.msra.mxu0 %v139
  %151 = vmatprep.subr.mxu0 0.0
  %152 = vmatpush1.msra.mxu0 %v138
  %153 = vmatprep.subr.mxu0 0.0
  %154 = vmatpush1.msra.mxu0 %v137
  %155 = vmatprep.subr.mxu0 0.0
  %156 = vmatpush1.msra.mxu0 %v136
  %157 = vmatprep.subr.mxu0 0.0
  %158 = vmatpush1.msra.mxu0 %v135
  %159 = vmatprep.subr.mxu0 0.0
  %160 = vmatpush1.msra.mxu0 %v134
  %161 = vmatprep.subr.mxu0 0.0
  %162 = vmatpush1.msra.mxu0 %v133
  %163 = vmatprep.subr.mxu0 0.0
  %164 = vmatpush1.msra.mxu0 %v132
  %165 = vmatprep.subr.mxu0 0.0
  %166 = vmatpush1.msra.mxu0 %v131
  %167 = vmatprep.subr.mxu0 0.0
  %168 = vmatpush1.msra.mxu0 %v130
  %169 = vmatprep.subr.mxu0 0.0
  %170 = vmatpush1.msra.mxu0 %v129
  %171 = vmatprep.subr.mxu0 0.0
  %172 = vmatpush1.msra.mxu0 %v128
  %173 = vmatprep.subr.mxu0 0.0
  %174 = vmatpush1.msra.mxu0 %v127
  %175 = vmatprep.subr.mxu0 0.0
  %176 = vmatpush2.msra.mxu0 0.0
  %177 = vmatprep.subr.mxu0 0.0
  %178 = vmatpush2.msra.mxu0 0.0
  %179 = vmatprep.subr.mxu0 0.0
  %180 = vmatpush2.msra.mxu0 0.0
  %181 = vmatprep.subr.mxu0 0.0
  %182 = vmatpush2.msra.mxu0 0.0
  %183 = vmatprep.subr.mxu0 0.0
  %184 = vmatpush2.msra.mxu0 0.0
  %185 = vmatprep.subr.mxu0 0.0
  %186 = vmatpush2.msra.mxu0 0.0
  %187 = vmatprep.subr.mxu0 0.0
  %188 = vmatpush2.msra.mxu0 0.0
  %189 = vmatprep.subr.mxu0 0.0
  %190 = vmatpush2.msra.mxu0 0.0
  %191 = vmatprep.subr.mxu0 0.0
  %192 = vmatpush2.msra.mxu0 0.0
  %193 = vmatprep.subr.mxu0 0.0
  %194 = vmatpush2.msra.mxu0 0.0
  %195 = vmatprep.subr.mxu0 0.0
  %196 = vmatpush2.msra.mxu0 0.0
  %197 = vmatprep.subr.mxu0 0.0
  %198 = vmatpush2.msra.mxu0 0.0
  %199 = vmatprep.subr.mxu0 0.0
  %200 = vmatpush2.msra.mxu0 0.0
  %201 = vmatprep.subr.mxu0 0.0
  %202 = vmatpush2.msra.mxu0 0.0
  %203 = vmatprep.subr.mxu0 0.0
  %204 = vmatpush2.msra.mxu0 0.0
  %205 = vmatprep.subr.mxu0 0.0
  %206 = vmatpush2.msra.mxu0 0.0
  %207 = vmatprep.mubr.f32.mxu0 0.0
  %208 = vmatmul.mubr.f32.gmra.mxu0 %v126
  %v209 = vpop.f32.mrf.mxu0
  %v210 = vadd.f32 0.0, %v209
  %v211 = vpop.f32.mrf.mxu0
  %212 = vdwg.mxu0
  %vm213 = vcmask 15360
  %214 = vst.msk [vmem:[%s6] sm:$0xff] %vm213, %v210
  // Predicated region
  $region26: #{s2cnn_feature_forward.3} parent=0 // pred_check
    _
  $region27: #{s2cnn_feature_forward.3} parent=0 // pred_check_branch
    %216 = sbr.rel (0) target = $region29
  $region28: #{s2cnn_feature_forward.3} parent=0 // pred_region
    _
  $region29: #{s2cnn_feature_forward.3} parent=0 // pred_fallthru
    _
  // Predicated region
  $region30: #{s2cnn_feature_forward.3} parent=0 // pred_check
    _
  $region31: #{s2cnn_feature_forward.3} parent=0 // pred_check_branch
    %218 = sbr.rel (0) target = $region33
  $region32: #{s2cnn_feature_forward.3} parent=0 // pred_region
    _
  $region33: #{s2cnn_feature_forward.3} parent=0 // pred_fallthru
    _

</llo_original>
